<compile_context>
chip_gen: v6e
topology: v6e:2x2x1
jax: 0.10.0
libtpu: 0.0.40
codegen_flags: <defaults>
</compile_context>

<pallas_src>
import functools

import jax
import jax.numpy as jnp
from jax.experimental import pallas as pl
from jax.experimental.pallas import tpu as pltpu

_VMEM_LIMIT = 48 * 1024 * 1024      # scoped-VMEM ceiling (< 64 MiB physical on v7x)
_VMEM_BUDGET = 36 * 1024 * 1024     # design target for resident blocks + temps


def _round_up(x, m):
    return -(-x // m) * m


# --------------------------------------------------------------------------
# Pass 1: per-row squared norms + global moments for the adaptive bandwidth.
# --------------------------------------------------------------------------
def _pass1_kernel(x_ref, sqn_ref, colsum_ref, sumsq_ref):
    """One grid step = one (tb, D) row block of the padded `total` array.

    Emits per-row squared norms (consumed by pass 2) and accumulates the two
    moments needed for
        sum_ij ||x_i - x_j||^2 = 2*N*sum_i||x_i||^2 - 2*||sum_i x_i||^2.
    Padded rows are all-zero, so they contribute nothing to the moments.
    """
    i = pl.program_id(0)
    x = x_ref[...].astype(jnp.float32)
    row_sq = jnp.sum(x * x, axis=1, keepdims=True)            # (tb, 1)
    sqn_ref[...] = row_sq

    @pl.when(i == 0)
    def _():
        colsum_ref[...] = jnp.zeros_like(colsum_ref)
        sumsq_ref[...] = jnp.zeros_like(sumsq_ref)

    colsum_ref[...] += jnp.sum(x, axis=0, keepdims=True)       # (1, D)
    sumsq_ref[...] += jnp.sum(row_sq, keepdims=True)           # (1, 1)


# --------------------------------------------------------------------------
# Pass 2: column-tiled, sign-weighted multi-bandwidth kernel sum.
# --------------------------------------------------------------------------
def _mmd_rbf_kernel(nib_ref, rows_ref, colsT_ref, sqr_ref, sqc_ref,
                    wr_ref, wc_ref, o_ref, *, kernel_num, exp_dtype):
    """One grid step = one (tm, tc) tile of the pairwise-kernel matrix.

    nib_ref  : (kernel_num,) f32 SMEM, nib[k] = -1 / bandwidth_k
    rows_ref : (tm, D)  row block (native dtype)
    colsT_ref: (D, tc)  pre-transposed column block (native dtype)
    sqr_ref  : (tm, 1)  row squared norms (f32, precomputed in pass 1)
    sqc_ref  : (1, tc)  column squared norms (f32)
    wr_ref   : (tm, 1)  row sign weights (+1/n_src, -1/n_tgt, 0 for pad)
    wc_ref   : (1, tc)  column sign weights
    o_ref    : (1, 8, 128) f32 per-row-tile partial, accumulated over the
               column grid axis (lane-dense scalar broadcast)
    """
    ct = pl.program_id(1)

    @pl.when(ct == 0)
    def _():
        o_ref[...] = jnp.zeros_like(o_ref)

    # Gram on the MXU in the input's native dtype, f32 accumulation.  The
    # RHS is pre-transposed in the wrapper -> plain (1,0) contraction, so no
    # per-tile XLU transpose is emitted.
    gram = jax.lax.dot_general(
        rows_ref[...], colsT_ref[...], (((1,), (0,)), ((), ())),
        preferred_element_type=jnp.float32)                     # (tm, tc)
    l2 = jnp.maximum(sqr_ref[...] + sqc_ref[...] - 2.0 * gram, 0.0)
    wprod = wr_ref[...] * wc_ref[...]                            # (tm, tc)

    # Multi-bandwidth Gaussian sum reduced per bandwidth: one scalar multiply
    # + one EUP exp + one weighted reduction each; no (tm, tc) ksum is kept
    # live across bandwidths.
    part = jnp.zeros((1, 1), jnp.float32)
    for k in range(kernel_num):
        z = l2 * nib_ref[k]
        if exp_dtype != jnp.float32:
            # bf16 EUP exp (v6e/v7x lever); accumulation stays f32.
            e = jnp.exp(z.astype(exp_dtype)).astype(jnp.float32)
        else:
            e = jnp.exp(z)
        part = part + jnp.sum(e * wprod, keepdims=True)

    o_ref[...] += pl.broadcast_to(part.reshape(1, 1, 1), (1, 8, 128))


# --------------------------------------------------------------------------
# Linear MMD branch.
# --------------------------------------------------------------------------
def _mmd_linear_kernel(src_ref, tgt_ref, o_ref):
    """linear_mmd2: ||mean(X) - mean(Y)||^2."""
    s = src_ref[...].astype(jnp.float32)
    t = tgt_ref[...].astype(jnp.float32)
    delta = (jnp.mean(s, axis=0, keepdims=True)
             - jnp.mean(t, axis=0, keepdims=True))               # (1, D)
    o_ref[...] = jnp.sum(delta * delta, keepdims=True)           # (1, 1)


# --------------------------------------------------------------------------
# Wrapper.
# --------------------------------------------------------------------------
def mmd_loss(source, target, *, kernel_type="rbf", kernel_mul=2.0,
             kernel_num=5, fix_sigma=None, row_tile=None, use_bf16_exp=False):
    """JAX/Pallas equivalent of MMDLoss.forward(source, target).

    `use_bf16_exp=True` runs the per-bandwidth exp in bf16 (faster EUP on
    v6e/v7x, small accuracy cost; keep False on v5e)."""
    if kernel_type == "linear":
        out = pl.pallas_call(
            _mmd_linear_kernel,
            out_shape=jax.ShapeDtypeStruct((1, 1), jnp.float32),
            in_specs=[pl.BlockSpec(memory_space=pltpu.MemorySpace.VMEM),
                      pl.BlockSpec(memory_space=pltpu.MemorySpace.VMEM)],
            out_specs=pl.BlockSpec(memory_space=pltpu.MemorySpace.VMEM),
        )(source, target)
        return out[0, 0]

    # ----- rbf branch -----
    n_src, d = source.shape
    n_tgt, d_t = target.shape
    assert d == d_t, "source/target feature dims must match"
    n_total = n_src + n_tgt
    kernel_num = int(kernel_num)
    kernel_mul = float(kernel_mul)

    # ---- tile sizes & row padding --------------------------------------
    if row_tile is None:
        row_tile = 256          # native LHS height for the 256x256 MXU (v6e/v7x)
    tm = max(8, min(_round_up(int(row_tile), 8), _round_up(n_total, 8)))
    n_pad = _round_up(n_total, tm)            # tm divides n_pad
    if n_pad % 512 == 0 and n_pad > 512:      # column tile: multiple of 128,
        tc = 512                              # or the whole (padded) set
    elif n_pad % 256 == 0 and n_pad > 256:
        tc = 256
    elif n_pad % 128 == 0 and n_pad > 128:
        tc = 128
    else:
        tc = n_pad

    # Keep resident blocks + f32 temporaries inside a fixed VMEM budget.
    itemsize = jnp.dtype(source.dtype).itemsize

    def _est(tm_, tc_):
        return (2 * (tm_ * d + d * tc_) * itemsize    # double-buffered blocks
                + 4 * tm_ * tc_ * 4)                  # gram/l2/wprod/exp temps

    while tc >= 256 and tc % 256 == 0 and _est(tm, tc) > _VMEM_BUDGET:
        tc //= 2                                      # stays a multiple of 128
    while tm >= 16 and tm % 16 == 0 and _est(tm, tc) > _VMEM_BUDGET:
        tm //= 2                                      # still divides n_pad

    # ---- padded concat (native dtype) + one-time transposed copy -------
    total = jnp.concatenate([source, target], axis=0)
    if n_pad != n_total:
        total = jnp.pad(total, ((0, n_pad - n_total), (0, 0)))
    total_t = total.T                                  # (D, n_pad)

    # Sign weights: +1/n_src (source), -1/n_tgt (target), 0 (pad rows).
    w = jnp.concatenate([
        jnp.full((n_src,), 1.0 / n_src, jnp.float32),
        jnp.full((n_tgt,), -1.0 / n_tgt, jnp.float32),
        jnp.zeros((n_pad - n_total,), jnp.float32)])
    w_row = w.reshape(n_pad, 1)
    w_col = w.reshape(1, n_pad)

    # ---- pass 1: per-row squared norms + bandwidth moments --------------
    n_rb = n_pad // tm
    sqn, colsum, sumsq = pl.pallas_call(
        _pass1_kernel,
        out_shape=(jax.ShapeDtypeStruct((n_pad, 1), jnp.float32),
                   jax.ShapeDtypeStruct((1, d), jnp.float32),
                   jax.ShapeDtypeStruct((1, 1), jnp.float32)),
        grid=(n_rb,),
        in_specs=[pl.BlockSpec((tm, d), lambda i: (i, 0))],
        out_specs=(pl.BlockSpec((tm, 1), lambda i: (i, 0)),
                   pl.BlockSpec((1, d), lambda i: (0, 0)),
                   pl.BlockSpec((1, 1), lambda i: (0, 0))),
        compiler_params=pltpu.CompilerParams(
            dimension_semantics=("arbitrary",),
            vmem_limit_bytes=_VMEM_LIMIT),
    )(total)
    sq_row = sqn                                       # (n_pad, 1)
    sq_col = sqn.reshape(1, n_pad)                     # (1, n_pad)

    # ---- bandwidth list -> -1/bw_k scalars (scalar-only glue) ------------
    if fix_sigma:   # mirrors the PyTorch truthiness check (0.0 -> adaptive)
        bw0 = jnp.float32(fix_sigma)
    else:
        sum_l2 = (2.0 * float(n_total) * sumsq[0, 0]
                  - 2.0 * jnp.sum(colsum * colsum))
        bw0 = sum_l2 / float(n_total * n_total - n_total)
    bw0 = bw0 / (kernel_mul ** (kernel_num // 2))
    scales = jnp.asarray([kernel_mul ** k for k in range(kernel_num)],
                         dtype=jnp.float32)
    neg_inv_bw = (-1.0 / (bw0 * scales)).astype(jnp.float32)   # (kernel_num,)

    # ---- pass 2: tiled weighted kernel sum -------------------------------
    n_rt = n_pad // tm
    n_ct = n_pad // tc
    exp_dtype = jnp.bfloat16 if use_bf16_exp else jnp.float32
    kern = functools.partial(_mmd_rbf_kernel, kernel_num=kernel_num,
                             exp_dtype=exp_dtype)
    parts = pl.pallas_call(
        kern,
        out_shape=jax.ShapeDtypeStruct((n_rt, 8, 128), jnp.float32),
        grid=(n_rt, n_ct),
        in_specs=[
            pl.BlockSpec(memory_space=pltpu.MemorySpace.SMEM),   # -1/bw_k
            pl.BlockSpec((tm, d), lambda r, c: (r, 0)),          # row block
            pl.BlockSpec((d, tc), lambda r, c: (0, c)),          # col block (pre-T)
            pl.BlockSpec((tm, 1), lambda r, c: (r, 0)),          # row sq norms
            pl.BlockSpec((1, tc), lambda r, c: (0, c)),          # col sq norms
            pl.BlockSpec((tm, 1), lambda r, c: (r, 0)),          # row weights
            pl.BlockSpec((1, tc), lambda r, c: (0, c)),          # col weights
        ],
        out_specs=pl.BlockSpec((1, 8, 128), lambda r, c: (r, 0, 0)),
        compiler_params=pltpu.CompilerParams(
            dimension_semantics=("parallel", "arbitrary"),       # v7x: 2 TCs
            vmem_limit_bytes=_VMEM_LIMIT),
    )(neg_inv_bw, total, total_t, sq_row, sq_col, w_row, w_col)

    # Final scalar add over per-row-tile partials (tiny, done in JAX).
    return jnp.sum(parts[:, 0, 0])


# --------------------------------------------------------------------------
# Pure-JAX reference mirroring the PyTorch code (broadcast-difference form).
# --------------------------------------------------------------------------
def _mmd_ref(source, target, kernel_mul=2.0, kernel_num=5):
    n = source.shape[0]
    m = target.shape[0]
    big_n = n + m
    total = jnp.concatenate([source.astype(jnp.float32),
                             target.astype(jnp.float32)], axis=0)
    diff = total[None, :, :] - total[:, None, :]
    l2 = jnp.sum(diff * diff, axis=-1)
    bw = jnp.sum(l2) / (big_n * big_n - big_n)
    bw = bw / (kernel_mul ** (kernel_num // 2))
    ker = sum(jnp.exp(-l2 / (bw * kernel_mul ** i)) for i in range(kernel_num))
    xx = jnp.mean(ker[:n, :n])
    yy = jnp.mean(ker[n:, n:])
    xy = jnp.mean(ker[:n, n:])
    yx = jnp.mean(ker[n:, :n])
    return xx + yy - xy - yx


if __name__ == "__main__":
    key = jax.random.PRNGKey(0)
    k1, k2, k3, k4, k5, k6 = jax.random.split(key, 6)

    # Test 1: equal-sized source/target (n * len(x) = 8 x 32), single tile.
    src = jax.random.normal(k1, (8, 32), dtype=jnp.float32)
    tgt = jax.random.normal(k2, (8, 32), dtype=jnp.float32) + 0.5
    loss = jax.block_until_ready(
        mmd_loss(src, tgt, kernel_type="rbf", kernel_mul=2.0, kernel_num=5))
    ref = jax.block_until_ready(_mmd_ref(src, tgt))
    assert abs(float(loss) - float(ref)) < 1e-3 * abs(float(ref)) + 3e-4, (
        float(loss), float(ref))

    # Test 2: unequal sizes + explicit small row tile -> zero-weight row
    # padding and a multi-row-tile grid.
    src2 = jax.random.normal(k3, (24, 40), dtype=jnp.float32)
    tgt2 = jax.random.normal(k4, (20, 40), dtype=jnp.float32) * 1.2 + 0.3
    loss2 = jax.block_until_ready(mmd_loss(src2, tgt2, row_tile=16))
    ref2 = jax.block_until_ready(_mmd_ref(src2, tgt2))
    assert abs(float(loss2) - float(ref2)) < 1e-3 * abs(float(ref2)) + 3e-4, (
        float(loss2), float(ref2))

    # Test 3: multi-column-tile grid (n_pad=256, tm=64, tc=128) exercising
    # the column-axis accumulation.
    src3 = jax.random.normal(k5, (160, 16), dtype=jnp.float32)
    tgt3 = jax.random.normal(k6, (96, 16), dtype=jnp.float32) * 1.1 + 0.3
    loss3 = jax.block_until_ready(mmd_loss(src3, tgt3, row_tile=64))
    ref3 = jax.block_until_ready(_mmd_ref(src3, tgt3))
    assert abs(float(loss3) - float(ref3)) < 1e-3 * abs(float(ref3)) + 3e-4, (
        float(loss3), float(ref3))

    # Test 4: linear branch.
    lin = jax.block_until_ready(mmd_loss(src, tgt, kernel_type="linear"))
    dvec = jnp.mean(src, 0) - jnp.mean(tgt, 0)
    lin_ref = float(jnp.dot(dvec, dvec))
    assert abs(float(lin) - lin_ref) < 1e-3 * abs(lin_ref) + 3e-4, (
        float(lin), lin_ref)

    print("KERNEL_OK")
</pallas_src>

<mosaic_0001>
module attributes {stable_mosaic.version = 11 : i64} {
  func.func @_pass1_kernel(%arg0: i32, %arg1: memref<16x32xf32, #tpu.memory_space<vmem>>, %arg2: memref<16x1xf32, #tpu.memory_space<vmem>>, %arg3: memref<1x32xf32, #tpu.memory_space<vmem>>, %arg4: memref<1x1xf32, #tpu.memory_space<vmem>>) attributes {dimension_semantics = [#tpu.dimension_semantics<arbitrary>], iteration_bounds = array<i64: 1>, scalar_prefetch = 0 : i64, scratch_operands = 0 : i64, tpu.core_type = #tpu.core_type<tc>, window_params = [{transform_indices = @transform_0, window_bounds = array<i64: 16, 32>}, {transform_indices = @transform_1, window_bounds = array<i64: 16, 1>}, {pipeline_mode = #tpu.pipeline_mode<synchronous>, transform_indices = @transform_2, window_bounds = array<i64: 1, 32>}, {pipeline_mode = #tpu.pipeline_mode<synchronous>, transform_indices = @transform_3, window_bounds = array<i64: 1, 1>}]} {
    %c0 = arith.constant 0 : index
    %c0_0 = arith.constant 0 : index
    %0 = vector.load %arg1[%c0, %c0_0] : memref<16x32xf32, #tpu.memory_space<vmem>>, vector<16x32xf32>
    %1 = arith.mulf %0, %0 : vector<16x32xf32>
    %cst = arith.constant dense<0.000000e+00> : vector<16xf32>
    %2 = vector.multi_reduction <add>, %1, %cst [1] : vector<16x32xf32> to vector<16xf32>
    %3 = vector.shape_cast %2 : vector<16xf32> to vector<16x1xf32>
    %c0_1 = arith.constant 0 : index
    %c0_2 = arith.constant 0 : index
    %4 = vector.load %arg2[%c0_1, %c0_2] : memref<16x1xf32, #tpu.memory_space<vmem>>, vector<16x1xf32>
    tpu.vector_store %arg2[%c0_1, %c0_2], %3 {strides = array<i32>} : memref<16x1xf32, #tpu.memory_space<vmem>>, vector<16x1xf32>,
    %c0_i32 = arith.constant 0 : i32
    %5 = arith.cmpi eq, %arg0, %c0_i32 : i32
    %6 = arith.extui %5 : i1 to i32
    %c0_i32_3 = arith.constant 0 : i32
    %7 = arith.cmpi ne, %6, %c0_i32_3 : i32
    scf.if %7 {
      %cst_14 = arith.constant 0.000000e+00 : f32
      %21 = vector.broadcast %cst_14 : f32 to vector<1x32xf32>
      %c0_15 = arith.constant 0 : index
      %c0_16 = arith.constant 0 : index
      %22 = vector.load %arg3[%c0_15, %c0_16] : memref<1x32xf32, #tpu.memory_space<vmem>>, vector<1x32xf32>
      tpu.vector_store %arg3[%c0_15, %c0_16], %21 {strides = array<i32>} : memref<1x32xf32, #tpu.memory_space<vmem>>, vector<1x32xf32>,
      %cst_17 = arith.constant 0.000000e+00 : f32
      %23 = vector.broadcast %cst_17 : f32 to vector<1x1xf32>
      %c0_18 = arith.constant 0 : index
      %c0_19 = arith.constant 0 : index
      %24 = vector.load %arg4[%c0_18, %c0_19] : memref<1x1xf32, #tpu.memory_space<vmem>>, vector<1x1xf32>
      tpu.vector_store %arg4[%c0_18, %c0_19], %23 {strides = array<i32>} : memref<1x1xf32, #tpu.memory_space<vmem>>, vector<1x1xf32>,
    } else {
    }
    %c0_4 = arith.constant 0 : index
    %c0_5 = arith.constant 0 : index
    %8 = vector.load %arg3[%c0_4, %c0_5] : memref<1x32xf32, #tpu.memory_space<vmem>>, vector<1x32xf32>
    %cst_6 = arith.constant dense<0.000000e+00> : vector<32xf32>
    %9 = vector.multi_reduction <add>, %0, %cst_6 [0] : vector<16x32xf32> to vector<32xf32>
    %10 = vector.shape_cast %9 : vector<32xf32> to vector<1x32xf32>
    %11 = arith.addf %8, %10 : vector<1x32xf32>
    %c0_7 = arith.constant 0 : index
    %c0_8 = arith.constant 0 : index
    %12 = vector.load %arg3[%c0_7, %c0_8] : memref<1x32xf32, #tpu.memory_space<vmem>>, vector<1x32xf32>
    tpu.vector_store %arg3[%c0_7, %c0_8], %11 {strides = array<i32>} : memref<1x32xf32, #tpu.memory_space<vmem>>, vector<1x32xf32>,
    %c0_9 = arith.constant 0 : index
    %c0_10 = arith.constant 0 : index
    %13 = vector.load %arg4[%c0_9, %c0_10] : memref<1x1xf32, #tpu.memory_space<vmem>>, vector<1x1xf32>
    %14 = vector.shape_cast %3 : vector<16x1xf32> to vector<1x16x1xf32>
    %cst_11 = arith.constant dense<0.000000e+00> : vector<1xf32>
    %15 = vector.multi_reduction <add>, %14, %cst_11 [1, 2] : vector<1x16x1xf32> to vector<1xf32>
    %16 = vector.shape_cast %15 : vector<1xf32> to vector<1x1x1xf32>
    %17 = vector.extract %16[0, 0, 0] : f32 from vector<1x1x1xf32>
    %18 = vector.broadcast %17 : f32 to vector<1x1xf32>
    %19 = arith.addf %13, %18 : vector<1x1xf32>
    %c0_12 = arith.constant 0 : index
    %c0_13 = arith.constant 0 : index
    %20 = vector.load %arg4[%c0_12, %c0_13] : memref<1x1xf32, #tpu.memory_space<vmem>>, vector<1x1xf32>
    tpu.vector_store %arg4[%c0_12, %c0_13], %19 {strides = array<i32>} : memref<1x1xf32, #tpu.memory_space<vmem>>, vector<1x1xf32>,
    return
  }
  func.func @transform_0(%arg0: i32) -> (i32, i32) {
    %c0_i32 = arith.constant 0 : i32
    %c0_i32_0 = arith.constant 0 : i32
    return %arg0, %c0_i32 : i32, i32
  }
  func.func @transform_1(%arg0: i32) -> (i32, i32) {
    %c0_i32 = arith.constant 0 : i32
    %c0_i32_0 = arith.constant 0 : i32
    return %arg0, %c0_i32 : i32, i32
  }
  func.func @transform_2(%arg0: i32) -> (i32, i32) {
    %c0_i32 = arith.constant 0 : i32
    %c0_i32_0 = arith.constant 0 : i32
    %c0_i32_1 = arith.constant 0 : i32
    return %c0_i32, %c0_i32_0 : i32, i32
  }
  func.func @transform_3(%arg0: i32) -> (i32, i32) {
    %c0_i32 = arith.constant 0 : i32
    %c0_i32_0 = arith.constant 0 : i32
    %c0_i32_1 = arith.constant 0 : i32
    return %c0_i32, %c0_i32_0 : i32, i32
  }
}

</mosaic_0001>

<llo_original>
// kernel: tpu_custom_call.1
$region0: #{tpu_custom_call.1}
  #allocation0 [shape = 'u32[]', space=smem, size = 0x4, offset = 0x4, fixed_abs, tag = 'smem constant byte address 0x4 - core index']
  #allocation1 [shape = 'u32[144,128]{1,0:T(1,128)}', space=vmem, size = 0x12000, scoped, tag = 'internal scratch']
  %s0 = inlined_call_operand.hbm [shape: f32[16,32], index: 0, kind: input, shape index: {}]
  %s1 = inlined_call_operand.vmem [shape: f32[16,1], index: 1, kind: output, shape index: {0}]
  %s2 = inlined_call_operand.hbm [shape: f32[1,32], index: 2, kind: output, shape index: {1}]
  %s3 = inlined_call_operand.hbm [shape: f32[1,1], index: 3, kind: output, shape index: {2}]
  %4 = xla_tuple %s1, %s2, %s3
  %s5 = sld [smem:[#allocation0]]
  $region38: #{tpu_custom_call.1} parent=0
    _
  %s7 = ssub.s32 1, %s5
  %s8 = scalar_select 0, %s7, %s5
  $region1: #{tpu_custom_call.1} parent=0
    #allocation2 [shape = 'u8[8192]{0}', space=vmem, size = 0x2000, scoped, tag = 'input window, operand 0, single buffered']
    #allocation3 [shape = 's32[1]{0}', space=sflag, size = 0x4, scoped, tag = 'scoped memory for tpu_custom_call.1']
    #allocation4 [shape = 's32[1]{0}', space=sflag, size = 0x4, scoped, tag = 'scoped memory for tpu_custom_call.1']
    #allocation5 [shape = 'u8[512]{0}', space=vmem, size = 0x400, scoped, tag = 'output window, operand 1, single buffered']
    #allocation6 [shape = 'u8[512]{0}', space=vmem, size = 0x400, scoped, tag = 'output window, operand 2, single buffered']
    #allocation7 [shape = 's32[1]{0}', space=sflag, size = 0x4, scoped, tag = 'scoped memory for tpu_custom_call.1']
    %9 = vsyncpa [#allocation3], 0
    %10 = vsyncpa [#allocation4], 0
    %11 = vsyncpa [#allocation7], 0
    // Predicated region
    $region2: #{tpu_custom_call.1} parent=1 // pred_check
      _
    $region3: #{tpu_custom_call.1} parent=1 // pred_check_branch
      %13 = sbr.rel (0) target = $region5
    $region4: #{tpu_custom_call.1} parent=1 // pred_region
      %s15 = ssub.s32 256, 256
      %16 = vsyncadd [#allocation3], %s15
      %s17 = sshll.u32 [#allocation2], 4
      %s18 = int_to_ptr.vmem [resolvable:$true] %s17
      %23 = dma.hbm_to_vmem [thread:$0]  %s0, 256, %s18, [#allocation3], 128, 128, 8
    $region5: #{tpu_custom_call.1} parent=1 // pred_fallthru
      _
    // Predicated region
    $region6: #{tpu_custom_call.1} parent=1 // pred_check
      _
    $region7: #{tpu_custom_call.1} parent=1 // pred_check_branch
      %25 = sbr.rel (0) target = $region9
    $region8: #{tpu_custom_call.1} parent=1 // pred_region
      %26 = dma.done [#allocation3], 256
    $region9: #{tpu_custom_call.1} parent=1 // pred_fallthru
      _
    %v27 = vld [vmem:[#allocation2] sm:$0xff]
    %v28 = vld [vmem:[#allocation2 + $0x8] sm:$0xff]
    %v29 = vmul.f32 %v27, %v27
    %v30 = vmul.f32 %v28, %v28
    %vm31 = vcmask 261120
    %v32 = vsel %vm31, %v29, 0.0
    %33 = vadd.xlane.f32.xlu0 %v32
    %v34 = vpop.xlane.xlu0 %33
    %v35 = vsel %vm31, %v30, 0.0
    %36 = vadd.xlane.f32.xlu0 %v35
    %v37 = vpop.xlane.xlu0 %36
    %vm38 = vcmask 7168
    %39 = vst.msk [vmem:[%s1] sm:$0xff] %vm38, %v34
    %40 = vst.msk [vmem:[%s1 + $0x8] sm:$0xff] %vm38, %v37
    %p41 = scmp.eq.s32.totalorder 0, 0
    // Predicated region
    $region10: #{tpu_custom_call.1} parent=1 // pred_check
      %p42 = pneg %p41
    $region11: #{tpu_custom_call.1} parent=1 // pred_check_branch
      %44 = sbr.rel (%p42) target = $region13
    $region12: #{tpu_custom_call.1} parent=1 // pred_region
      %vm45 = vcmask 253952
      %46 = vst.msk [vmem:[#allocation5] sm:$0x1] %vm45, 0.0
      %vm47 = vcmask 0
      %48 = vst.msk [vmem:[#allocation6] sm:$0x1] %vm47, 0.0
    $region13: #{tpu_custom_call.1} parent=1 // pred_fallthru
      _
    %v49 = vld [vmem:[#allocation5] sm:$0x1]
    %v50 = vsel %vm31, %v27, 0.0
    %v51 = vsel %vm31, %v28, 0.0
    %v52 = vadd.f32 %v50, %v51
    %v53 = vrot.slane %v52, 4
    %v54 = vadd.f32 %v52, %v53
    %v55 = vrot.slane %v54, 2
    %v56 = vadd.f32 %v54, %v55
    %v57 = vrot.slane %v56, 1
    %v58 = vadd.f32 %v56, %v57
    %v59 = vadd.f32 %v49, %v58
    %vm60 = vcmask 253952
    %61 = vst.msk [vmem:[#allocation5] sm:$0x1] %vm60, %v59
    %v62 = vld [vmem:[#allocation6] sm:$0x1]
    %v63 = vsel %vm38, %v34, 0.0
    %v64 = vsel %vm38, %v37, 0.0
    %v65 = vadd.f32 %v63, %v64
    %66 = vadd.xlane.f32.xlu0 %v65
    %v67 = vpop.xlane.xlu0 %66
    %v68 = vrot.slane %v67, 4
    %v69 = vadd.f32 %v67, %v68
    %v70 = vrot.slane %v69, 2
    %v71 = vadd.f32 %v69, %v70
    %v72 = vrot.slane %v71, 1
    %v73 = vadd.f32 %v71, %v72
    %s74 = vtos %v73
    %v75 = vstv %s74
    %v76 = vadd.f32 %v62, %v75
    %vm77 = vcmask 0
    %78 = vst.msk [vmem:[#allocation6] sm:$0x1] %vm77, %v76
    // Predicated region
    $region14: #{tpu_custom_call.1} parent=1 // pred_check
      _
    $region15: #{tpu_custom_call.1} parent=1 // pred_check_branch
      %80 = sbr.rel (0) target = $region17
    $region16: #{tpu_custom_call.1} parent=1 // pred_region
      _
    $region17: #{tpu_custom_call.1} parent=1 // pred_fallthru
      _
    // Predicated region
    $region18: #{tpu_custom_call.1} parent=1 // pred_check
      _
    $region19: #{tpu_custom_call.1} parent=1 // pred_check_branch
      %82 = sbr.rel (0) target = $region21
    $region20: #{tpu_custom_call.1} parent=1 // pred_region
      %s84 = ssub.s32 16, 16
      %85 = vsyncadd [#allocation4], %s84
      %s87 = sshll.u32 [#allocation5], 4
      %s88 = int_to_ptr.vmem [resolvable:$true] %s87
      %90 = dma.vmem_to_hbm [thread:$0]  %s88, 16, %s2, [#allocation4]
    $region21: #{tpu_custom_call.1} parent=1 // pred_fallthru
      _
    // Predicated region
    $region22: #{tpu_custom_call.1} parent=1 // pred_check
      _
    $region23: #{tpu_custom_call.1} parent=1 // pred_check_branch
      %92 = sbr.rel (0) target = $region25
    $region24: #{tpu_custom_call.1} parent=1 // pred_region
      %s94 = ssub.s32 16, 16
      %95 = vsyncadd [#allocation7], %s94
      %s97 = sshll.u32 [#allocation6], 4
      %s98 = int_to_ptr.vmem [resolvable:$true] %s97
      %100 = dma.vmem_to_hbm [thread:$0]  %s98, 16, %s3, [#allocation7]
    $region25: #{tpu_custom_call.1} parent=1 // pred_fallthru
      _
    // Predicated region
    $region26: #{tpu_custom_call.1} parent=1 // pred_check
      _
    $region27: #{tpu_custom_call.1} parent=1 // pred_check_branch
      %102 = sbr.rel (0) target = $region29
    $region28: #{tpu_custom_call.1} parent=1 // pred_region
      _
    $region29: #{tpu_custom_call.1} parent=1 // pred_fallthru
      _
    // Predicated region
    $region30: #{tpu_custom_call.1} parent=1 // pred_check
      _
    $region31: #{tpu_custom_call.1} parent=1 // pred_check_branch
      %104 = sbr.rel (0) target = $region33
    $region32: #{tpu_custom_call.1} parent=1 // pred_region
      %105 = dma.done [#allocation4], 16
    $region33: #{tpu_custom_call.1} parent=1 // pred_fallthru
      _
    // Predicated region
    $region34: #{tpu_custom_call.1} parent=1 // pred_check
      _
    $region35: #{tpu_custom_call.1} parent=1 // pred_check_branch
      %107 = sbr.rel (0) target = $region37
    $region36: #{tpu_custom_call.1} parent=1 // pred_region
      %108 = dma.done [#allocation7], 16
    $region37: #{tpu_custom_call.1} parent=1 // pred_fallthru
      _
    %109 = vsyncpa [#allocation3], 1
    %110 = vsyncpa [#allocation4], 1
    %111 = vsyncpa [#allocation7], 1

</llo_original>
